<compile_context>
chip_gen: v6e
topology: v6e:2x2x1
jax: 0.10.0
libtpu: 0.0.40
codegen_flags: <defaults>
</compile_context>

<pallas_src>
import jax
import jax.numpy as jnp
from jax.experimental import pallas as pl
from jax.experimental.pallas import tpu as pltpu

INPUT_DIM = 8
H1, H2, H3 = 64, 32, 16
OUTPUT_DIM = 1
LANE = 128

# Per-batch-column FLOPs / HBM bytes for the cost estimate.
_FLOPS_PER_COL = 2 * (INPUT_DIM * H1 + H1 * H2 + H2 * H3 + H3 * OUTPUT_DIM)  # 6176
_BYTES_PER_COL = (INPUT_DIM + OUTPUT_DIM) * 4                                # ~36 B
# Rough live-VMEM footprint per batch column (x double-buffered + f32
# intermediates h1/h2/h3/y + double-buffered output).
_VMEM_BYTES_PER_COL = 2 * INPUT_DIM * 4 + (H1 + H2 + H3 + OUTPUT_DIM) * 4 + 2 * OUTPUT_DIM * 4


def mlp_kernel(xt_ref,
               w1_ref, b1_ref,
               w2_ref, b2_ref,
               w3_ref, b3_ref,
               w4_ref, b4_ref,
               o_ref):
    # Activations are [feat, batch_tile]: batch on the lane axis, so every
    # VPU op, MXU operand and the final store are fully lane-dense.
    xt = xt_ref[...]                                                    # [8,  Bt]
    h = jnp.dot(w1_ref[...], xt, preferred_element_type=jnp.float32)   # [64, Bt]
    h = jnp.maximum(h + b1_ref[...], 0.0)                              # bias/ReLU in f32
    h = jnp.dot(w2_ref[...], h.astype(w2_ref.dtype),
                preferred_element_type=jnp.float32)                    # [32, Bt]
    h = jnp.maximum(h + b2_ref[...], 0.0)
    h = jnp.dot(w3_ref[...], h.astype(w3_ref.dtype),
                preferred_element_type=jnp.float32)                    # [16, Bt]
    h = jnp.maximum(h + b3_ref[...], 0.0)
    y = jnp.dot(w4_ref[...], h.astype(w4_ref.dtype),
                preferred_element_type=jnp.float32)                    # [1,  Bt]
    y = y + b4_ref[0, 0]                                               # scalar bias from SMEM
    o_ref[...] = y.astype(o_ref.dtype)


def _round_down_lane(n):
    return max(LANE, (n // LANE) * LANE)


def _choose_tile(padded_B, max_tile):
    tile = min(max_tile, padded_B)
    # v7x megacore: guarantee >= 2 grid steps whenever there is enough work so
    # ("parallel",) can shard the grid across both TensorCores. No-op on v5e/v6e.
    if padded_B >= 2 * LANE:
        tile = min(tile, padded_B // 2)
    return _round_down_lane(tile)


def concrete_net_forward_t(xt, params, *, max_tile=32768, use_bf16=False):
    """Feature-major entry point (preferred): xt is [INPUT_DIM, B] float32.

    Avoids any wrapper-side transpose; avoids padding entirely when B is a
    multiple of the chosen tile. Returns [OUTPUT_DIM, B].
    Default max_tile=32768 is the v7x-safe cap; raise to 65536 on v5e/v6e.
    """
    F, B = xt.shape
    assert F == INPUT_DIM

    padded_B = max(LANE, pl.cdiv(B, LANE) * LANE)
    tile = _choose_tile(padded_B, max_tile)
    padded_B = pl.cdiv(padded_B, tile) * tile
    if padded_B != B:
        xt = jnp.pad(xt, ((0, 0), (0, padded_B - B)))

    w1, b1 = params["w1"], params["b1"]  # [64, 8],  [64, 1]
    w2, b2 = params["w2"], params["b2"]  # [32, 64], [32, 1]
    w3, b3 = params["w3"], params["b3"]  # [16, 32], [16, 1]
    w4, b4 = params["w4"], params["b4"]  # [1, 16],  [1, 1]

    if use_bf16:
        # Halves the dominant HBM stream; biases stay f32, accumulation is f32.
        xt = xt.astype(jnp.bfloat16)
        w1, w2, w3, w4 = (w.astype(jnp.bfloat16) for w in (w1, w2, w3, w4))

    def full_spec(a):
        # Whole-array block with a grid-invariant index map: fetched once,
        # not re-DMA'd per grid step.
        return pl.BlockSpec(a.shape, lambda i: (0,) * a.ndim)

    grid = (padded_B // tile,)
    cost = pl.CostEstimate(
        flops=_FLOPS_PER_COL * padded_B,
        transcendentals=0,
        bytes_accessed=_BYTES_PER_COL * padded_B + 16 * 1024,
    )
    vmem_limit = int(min(128 << 20, max(32 << 20, _VMEM_BYTES_PER_COL * tile * 3 // 2)))

    out_t = pl.pallas_call(
        mlp_kernel,
        out_shape=jax.ShapeDtypeStruct((OUTPUT_DIM, padded_B), jnp.float32),
        grid_spec=pltpu.PrefetchScalarGridSpec(
            num_scalar_prefetch=0,
            grid=grid,
            in_specs=[
                pl.BlockSpec((INPUT_DIM, tile), lambda i: (0, i)),
                full_spec(w1), full_spec(b1),
                full_spec(w2), full_spec(b2),
                full_spec(w3), full_spec(b3),
                full_spec(w4),
                pl.BlockSpec(memory_space=pltpu.MemorySpace.SMEM),  # b4 scalar
            ],
            out_specs=pl.BlockSpec((OUTPUT_DIM, tile), lambda i: (0, i)),
        ),
        compiler_params=pltpu.CompilerParams(
            dimension_semantics=("parallel",),
            vmem_limit_bytes=vmem_limit,
        ),
        cost_estimate=cost,
    )(xt, w1, b1, w2, b2, w3, b3, w4, b4)

    return out_t[:, :B]  # [OUTPUT_DIM, B]


def concrete_net_forward(x, params, *, max_tile=32768, use_bf16=False):
    """PyTorch-interface entry: x is [B, INPUT_DIM] float32 -> [B, OUTPUT_DIM].

    Note: this path pays one wrapper-side transpose of x in HBM. If the
    producer can emit feature-major activations, call concrete_net_forward_t
    directly and skip it.
    """
    B, F = x.shape
    assert F == INPUT_DIM
    out_t = concrete_net_forward_t(x.T, params, max_tile=max_tile, use_bf16=use_bf16)
    return out_t.T  # [B, OUTPUT_DIM]


def init_params(key):
    """Deterministic init matching torch.nn.Linear's default scheme.
    Weights kept in PyTorch-native [out, in] layout; biases as [out, 1]."""
    dims = [(INPUT_DIM, H1), (H1, H2), (H2, H3), (H3, OUTPUT_DIM)]
    params = {}
    for idx, (fan_in, fan_out) in enumerate(dims, start=1):
        key, kw, kb = jax.random.split(key, 3)
        bound = 1.0 / jnp.sqrt(fan_in)
        w = jax.random.uniform(kw, (fan_out, fan_in), jnp.float32, -bound, bound)
        b = jax.random.uniform(kb, (fan_out, 1), jnp.float32, -bound, bound)
        params[f"w{idx}"] = w
        params[f"b{idx}"] = b
    return params


def reference_forward(x, params):
    h = jnp.maximum(x @ params["w1"].T + params["b1"].T, 0.0)
    h = jnp.maximum(h @ params["w2"].T + params["b2"].T, 0.0)
    h = jnp.maximum(h @ params["w3"].T + params["b3"].T, 0.0)
    return h @ params["w4"].T + params["b4"].T


if __name__ == "__main__":
    key = jax.random.PRNGKey(0)
    key, kx = jax.random.split(key)
    B = 16
    x = jax.random.normal(kx, (B, INPUT_DIM), jnp.float32)
    params = init_params(key)

    ref = reference_forward(x, params)

    # PyTorch-interface path ([B, 8] input).
    out = jax.block_until_ready(concrete_net_forward(x, params))
    assert out.shape == (B, OUTPUT_DIM)
    assert jnp.allclose(out, ref, atol=1e-5, rtol=1e-5), "mismatch vs JAX reference"

    # Preferred feature-major path ([8, B] input, no wrapper transpose).
    out_t = jax.block_until_ready(concrete_net_forward_t(x.T, params))
    assert out_t.shape == (OUTPUT_DIM, B)
    assert jnp.allclose(out_t.T, ref, atol=1e-5, rtol=1e-5), "mismatch (feature-major path)"

    # Multi-tile path (exercises the >=2-step grid used for v7x megacore sharding).
    B2 = 512
    key, kx2 = jax.random.split(key)
    x2 = jax.random.normal(kx2, (B2, INPUT_DIM), jnp.float32)
    out2 = jax.block_until_ready(concrete_net_forward(x2, params))
    assert jnp.allclose(out2, reference_forward(x2, params), atol=1e-5, rtol=1e-5)

    print("KERNEL_OK")
</pallas_src>

<mosaic_0001>
module attributes {stable_mosaic.version = 11 : i64} {
  func.func @mlp_kernel(%arg0: i32, %arg1: memref<8x128xf32, #tpu.memory_space<vmem>>, %arg2: memref<64x8xf32, #tpu.memory_space<vmem>>, %arg3: memref<64x1xf32, #tpu.memory_space<vmem>>, %arg4: memref<32x64xf32, #tpu.memory_space<vmem>>, %arg5: memref<32x1xf32, #tpu.memory_space<vmem>>, %arg6: memref<16x32xf32, #tpu.memory_space<vmem>>, %arg7: memref<16x1xf32, #tpu.memory_space<vmem>>, %arg8: memref<1x16xf32, #tpu.memory_space<vmem>>, %arg9: memref<1x1xf32, #tpu.memory_space<smem>>, %arg10: memref<1x128xf32, #tpu.memory_space<vmem>>) attributes {dimension_semantics = [#tpu.dimension_semantics<parallel>], iteration_bounds = array<i64: 1>, scalar_prefetch = 0 : i64, scratch_operands = 0 : i64, tpu.core_type = #tpu.core_type<tc>, window_params = [{transform_indices = @transform_0, window_bounds = array<i64: 8, 128>}, {pipeline_mode = #tpu.pipeline_mode<synchronous>, transform_indices = @transform_1, window_bounds = array<i64: 64, 8>}, {pipeline_mode = #tpu.pipeline_mode<synchronous>, transform_indices = @transform_2, window_bounds = array<i64: 64, 1>}, {pipeline_mode = #tpu.pipeline_mode<synchronous>, transform_indices = @transform_3, window_bounds = array<i64: 32, 64>}, {pipeline_mode = #tpu.pipeline_mode<synchronous>, transform_indices = @transform_4, window_bounds = array<i64: 32, 1>}, {pipeline_mode = #tpu.pipeline_mode<synchronous>, transform_indices = @transform_5, window_bounds = array<i64: 16, 32>}, {pipeline_mode = #tpu.pipeline_mode<synchronous>, transform_indices = @transform_6, window_bounds = array<i64: 16, 1>}, {pipeline_mode = #tpu.pipeline_mode<synchronous>, transform_indices = @transform_7, window_bounds = array<i64: 1, 16>}, {transform_indices = @transform_8, window_bounds = array<i64: 1, 1>}, {transform_indices = @transform_9, window_bounds = array<i64: 1, 128>}]} {
    %c0 = arith.constant 0 : index
    %c0_0 = arith.constant 0 : index
    %0 = vector.load %arg1[%c0, %c0_0] : memref<8x128xf32, #tpu.memory_space<vmem>>, vector<8x128xf32>
    %c0_1 = arith.constant 0 : index
    %c0_2 = arith.constant 0 : index
    %1 = vector.load %arg2[%c0_1, %c0_2] : memref<64x8xf32, #tpu.memory_space<vmem>>, vector<64x8xf32>
    %cst = arith.constant dense<0.000000e+00> : vector<64x128xf32>
    %2 = tpu.matmul %1, %0, %cst {dimension_numbers = #tpu.dot_dimension_numbers<[1], [0], [0], [1], [0, 0, 1, 1], [], []>} : vector<64x8xf32>, vector<8x128xf32>, vector<64x128xf32> -> vector<64x128xf32>
    %c0_3 = arith.constant 0 : index
    %c0_4 = arith.constant 0 : index
    %3 = vector.load %arg3[%c0_3, %c0_4] : memref<64x1xf32, #tpu.memory_space<vmem>>, vector<64x1xf32>
    %4 = vector.broadcast %3 : vector<64x1xf32> to vector<64x128xf32>
    %5 = arith.addf %2, %4 : vector<64x128xf32>
    %cst_5 = arith.constant 0.000000e+00 : f32
    %6 = vector.broadcast %cst_5 : f32 to vector<64x128xf32>
    %7 = arith.maximumf %5, %6 : vector<64x128xf32>
    %c0_6 = arith.constant 0 : index
    %c0_7 = arith.constant 0 : index
    %8 = vector.load %arg4[%c0_6, %c0_7] : memref<32x64xf32, #tpu.memory_space<vmem>>, vector<32x64xf32>
    %cst_8 = arith.constant dense<0.000000e+00> : vector<32x128xf32>
    %9 = tpu.matmul %8, %7, %cst_8 {dimension_numbers = #tpu.dot_dimension_numbers<[1], [0], [0], [1], [0, 0, 1, 1], [], []>} : vector<32x64xf32>, vector<64x128xf32>, vector<32x128xf32> -> vector<32x128xf32>
    %c0_9 = arith.constant 0 : index
    %c0_10 = arith.constant 0 : index
    %10 = vector.load %arg5[%c0_9, %c0_10] : memref<32x1xf32, #tpu.memory_space<vmem>>, vector<32x1xf32>
    %11 = vector.broadcast %10 : vector<32x1xf32> to vector<32x128xf32>
    %12 = arith.addf %9, %11 : vector<32x128xf32>
    %cst_11 = arith.constant 0.000000e+00 : f32
    %13 = vector.broadcast %cst_11 : f32 to vector<32x128xf32>
    %14 = arith.maximumf %12, %13 : vector<32x128xf32>
    %c0_12 = arith.constant 0 : index
    %c0_13 = arith.constant 0 : index
    %15 = vector.load %arg6[%c0_12, %c0_13] : memref<16x32xf32, #tpu.memory_space<vmem>>, vector<16x32xf32>
    %cst_14 = arith.constant dense<0.000000e+00> : vector<16x128xf32>
    %16 = tpu.matmul %15, %14, %cst_14 {dimension_numbers = #tpu.dot_dimension_numbers<[1], [0], [0], [1], [0, 0, 1, 1], [], []>} : vector<16x32xf32>, vector<32x128xf32>, vector<16x128xf32> -> vector<16x128xf32>
    %c0_15 = arith.constant 0 : index
    %c0_16 = arith.constant 0 : index
    %17 = vector.load %arg7[%c0_15, %c0_16] : memref<16x1xf32, #tpu.memory_space<vmem>>, vector<16x1xf32>
    %18 = vector.broadcast %17 : vector<16x1xf32> to vector<16x128xf32>
    %19 = arith.addf %16, %18 : vector<16x128xf32>
    %cst_17 = arith.constant 0.000000e+00 : f32
    %20 = vector.broadcast %cst_17 : f32 to vector<16x128xf32>
    %21 = arith.maximumf %19, %20 : vector<16x128xf32>
    %c0_18 = arith.constant 0 : index
    %c0_19 = arith.constant 0 : index
    %22 = vector.load %arg8[%c0_18, %c0_19] : memref<1x16xf32, #tpu.memory_space<vmem>>, vector<1x16xf32>
    %cst_20 = arith.constant dense<0.000000e+00> : vector<1x128xf32>
    %23 = tpu.matmul %22, %21, %cst_20 {dimension_numbers = #tpu.dot_dimension_numbers<[1], [0], [0], [1], [0, 0, 1, 1], [], []>} : vector<1x16xf32>, vector<16x128xf32>, vector<1x128xf32> -> vector<1x128xf32>
    %c0_21 = arith.constant 0 : index
    %c0_22 = arith.constant 0 : index
    %24 = memref.load %arg9[%c0_21, %c0_22] : memref<1x1xf32, #tpu.memory_space<smem>>
    %25 = vector.broadcast %24 : f32 to vector<1x128xf32>
    %26 = arith.addf %23, %25 : vector<1x128xf32>
    %c0_23 = arith.constant 0 : index
    %c0_24 = arith.constant 0 : index
    %27 = vector.load %arg10[%c0_23, %c0_24] : memref<1x128xf32, #tpu.memory_space<vmem>>, vector<1x128xf32>
    tpu.vector_store %arg10[%c0_23, %c0_24], %26 {strides = array<i32>} : memref<1x128xf32, #tpu.memory_space<vmem>>, vector<1x128xf32>,
    return
  }
  func.func @transform_0(%arg0: i32) -> (i32, i32) {
    %c0_i32 = arith.constant 0 : i32
    %c0_i32_0 = arith.constant 0 : i32
    return %c0_i32, %arg0 : i32, i32
  }
  func.func @transform_1(%arg0: i32) -> (i32, i32) {
    %c0_i32 = arith.constant 0 : i32
    %c0_i32_0 = arith.constant 0 : i32
    %c0_i32_1 = arith.constant 0 : i32
    return %c0_i32, %c0_i32_0 : i32, i32
  }
  func.func @transform_2(%arg0: i32) -> (i32, i32) {
    %c0_i32 = arith.constant 0 : i32
    %c0_i32_0 = arith.constant 0 : i32
    %c0_i32_1 = arith.constant 0 : i32
    return %c0_i32, %c0_i32_0 : i32, i32
  }
  func.func @transform_3(%arg0: i32) -> (i32, i32) {
    %c0_i32 = arith.constant 0 : i32
    %c0_i32_0 = arith.constant 0 : i32
    %c0_i32_1 = arith.constant 0 : i32
    return %c0_i32, %c0_i32_0 : i32, i32
  }
  func.func @transform_4(%arg0: i32) -> (i32, i32) {
    %c0_i32 = arith.constant 0 : i32
    %c0_i32_0 = arith.constant 0 : i32
    %c0_i32_1 = arith.constant 0 : i32
    return %c0_i32, %c0_i32_0 : i32, i32
  }
  func.func @transform_5(%arg0: i32) -> (i32, i32) {
    %c0_i32 = arith.constant 0 : i32
    %c0_i32_0 = arith.constant 0 : i32
    %c0_i32_1 = arith.constant 0 : i32
    return %c0_i32, %c0_i32_0 : i32, i32
  }
  func.func @transform_6(%arg0: i32) -> (i32, i32) {
    %c0_i32 = arith.constant 0 : i32
    %c0_i32_0 = arith.constant 0 : i32
    %c0_i32_1 = arith.constant 0 : i32
    return %c0_i32, %c0_i32_0 : i32, i32
  }
  func.func @transform_7(%arg0: i32) -> (i32, i32) {
    %c0_i32 = arith.constant 0 : i32
    %c0_i32_0 = arith.constant 0 : i32
    %c0_i32_1 = arith.constant 0 : i32
    return %c0_i32, %c0_i32_0 : i32, i32
  }
  func.func @transform_8(%arg0: i32) -> (i32, i32) {
    %c0_i32 = arith.constant 0 : i32
    %c0_i32_0 = arith.constant 0 : i32
    %c0_i32_1 = arith.constant 0 : i32
    return %c0_i32, %c0_i32_0 : i32, i32
  }
  func.func @transform_9(%arg0: i32) -> (i32, i32) {
    %c0_i32 = arith.constant 0 : i32
    %c0_i32_0 = arith.constant 0 : i32
    return %c0_i32, %arg0 : i32, i32
  }
}

</mosaic_0001>

<llo_original>
// kernel: tpu_custom_call.1
$region0: #{tpu_custom_call.1}
  #allocation0 [shape = 'u32[]', space=smem, size = 0x4, offset = 0x4, fixed_abs, tag = 'smem constant byte address 0x4 - core index']
  #allocation1 [shape = 'u32[144,128]{1,0:T(1,128)}', space=vmem, size = 0x12000, scoped, tag = 'internal scratch']
  #allocation2 [shape = 'f32[1,1]{1,0:T(1,128)S(6)}', space=smem, size = 0x200, scoped, tag = 'scoped memory for tpu_custom_call.1']
  %s0 = inlined_call_operand.vmem [shape: f32[8,128], index: 0, kind: input, shape index: {}]
  %s1 = inlined_call_operand.vmem [shape: f32[64,8], index: 1, kind: input, shape index: {}]
  %s2 = inlined_call_operand.vmem [shape: f32[64,1], index: 2, kind: input, shape index: {}]
  %s3 = inlined_call_operand.vmem [shape: f32[32,64], index: 3, kind: input, shape index: {}]
  %s4 = inlined_call_operand.vmem [shape: f32[32,1], index: 4, kind: input, shape index: {}]
  %s5 = inlined_call_operand.vmem [shape: f32[16,32], index: 5, kind: input, shape index: {}]
  %s6 = inlined_call_operand.vmem [shape: f32[16,1], index: 6, kind: input, shape index: {}]
  %s7 = inlined_call_operand.vmem [shape: f32[1,16], index: 7, kind: input, shape index: {}]
  %s8 = inlined_call_operand.<no memory space> [shape: f32[1,1], index: 8, kind: input, shape index: {}]
  %s9 = inlined_call_operand.hbm [shape: f32[1,128], index: 9, kind: output, shape index: {}]
  %s10 = sld [smem:[#allocation0]]
  $region46: #{tpu_custom_call.1} parent=0
    _
  %s12 = ssub.s32 1, %s10
  %s13 = scalar_select 0, %s12, %s10
  %14 = sst [smem:[#allocation2]] %s8
  $region1: #{tpu_custom_call.1} parent=0
    #allocation3 [shape = 'u8[512]{0}', space=vmem, size = 0x400, scoped, tag = 'output window, operand 0, single buffered']
    #allocation4 [shape = 's32[1]{0}', space=sflag, size = 0x4, scoped, tag = 'scoped memory for tpu_custom_call.1']
    %15 = vsyncpa [#allocation4], 0
    // Predicated region
    $region2: #{tpu_custom_call.1} parent=1 // pred_check
      _
    $region3: #{tpu_custom_call.1} parent=1 // pred_check_branch
      %17 = sbr.rel (0) target = $region5
    $region4: #{tpu_custom_call.1} parent=1 // pred_region
      _
    $region5: #{tpu_custom_call.1} parent=1 // pred_fallthru
      _
    // Predicated region
    $region6: #{tpu_custom_call.1} parent=1 // pred_check
      _
    $region7: #{tpu_custom_call.1} parent=1 // pred_check_branch
      %19 = sbr.rel (0) target = $region9
    $region8: #{tpu_custom_call.1} parent=1 // pred_region
      _
    $region9: #{tpu_custom_call.1} parent=1 // pred_fallthru
      _
    // Predicated region
    $region10: #{tpu_custom_call.1} parent=1 // pred_check
      _
    $region11: #{tpu_custom_call.1} parent=1 // pred_check_branch
      %21 = sbr.rel (0) target = $region13
    $region12: #{tpu_custom_call.1} parent=1 // pred_region
      _
    $region13: #{tpu_custom_call.1} parent=1 // pred_fallthru
      _
    // Predicated region
    $region14: #{tpu_custom_call.1} parent=1 // pred_check
      _
    $region15: #{tpu_custom_call.1} parent=1 // pred_check_branch
      %23 = sbr.rel (0) target = $region17
    $region16: #{tpu_custom_call.1} parent=1 // pred_region
      _
    $region17: #{tpu_custom_call.1} parent=1 // pred_fallthru
      _
    // Predicated region
    $region18: #{tpu_custom_call.1} parent=1 // pred_check
      _
    $region19: #{tpu_custom_call.1} parent=1 // pred_check_branch
      %25 = sbr.rel (0) target = $region21
    $region20: #{tpu_custom_call.1} parent=1 // pred_region
      _
    $region21: #{tpu_custom_call.1} parent=1 // pred_fallthru
      _
    // Predicated region
    $region22: #{tpu_custom_call.1} parent=1 // pred_check
      _
    $region23: #{tpu_custom_call.1} parent=1 // pred_check_branch
      %27 = sbr.rel (0) target = $region25
    $region24: #{tpu_custom_call.1} parent=1 // pred_region
      _
    $region25: #{tpu_custom_call.1} parent=1 // pred_fallthru
      _
    // Predicated region
    $region26: #{tpu_custom_call.1} parent=1 // pred_check
      _
    $region27: #{tpu_custom_call.1} parent=1 // pred_check_branch
      %29 = sbr.rel (0) target = $region29
    $region28: #{tpu_custom_call.1} parent=1 // pred_region
      _
    $region29: #{tpu_custom_call.1} parent=1 // pred_fallthru
      _
    // Predicated region
    $region30: #{tpu_custom_call.1} parent=1 // pred_check
      _
    $region31: #{tpu_custom_call.1} parent=1 // pred_check_branch
      %31 = sbr.rel (0) target = $region33
    $region32: #{tpu_custom_call.1} parent=1 // pred_region
      _
    $region33: #{tpu_custom_call.1} parent=1 // pred_fallthru
      _
    // Predicated region
    $region34: #{tpu_custom_call.1} parent=1 // pred_check
      _
    $region35: #{tpu_custom_call.1} parent=1 // pred_check_branch
      %33 = sbr.rel (0) target = $region37
    $region36: #{tpu_custom_call.1} parent=1 // pred_region
      _
    $region37: #{tpu_custom_call.1} parent=1 // pred_fallthru
      _
    %v34 = vld [vmem:[%s0] sm:$0xff]
    %v35 = vld [vmem:[%s1] sm:$0xff]
    %v36 = vld [vmem:[%s1 + $0x8] sm:$0xff]
    %v37 = vld [vmem:[%s1 + $0x10] sm:$0xff]
    %v38 = vld [vmem:[%s1 + $0x18] sm:$0xff]
    %v39 = vld [vmem:[%s1 + $0x20] sm:$0xff]
    %v40 = vld [vmem:[%s1 + $0x28] sm:$0xff]
    %v41 = vld [vmem:[%s1 + $0x30] sm:$0xff]
    %v42 = vld [vmem:[%s1 + $0x38] sm:$0xff]
    %v43 = vld [vmem:[%s2] sm:$0xff]
    %v44 = vld [vmem:[%s2 + $0x8] sm:$0xff]
    %v45 = vld [vmem:[%s2 + $0x10] sm:$0xff]
    %v46 = vld [vmem:[%s2 + $0x18] sm:$0xff]
    %v47 = vld [vmem:[%s2 + $0x20] sm:$0xff]
    %v48 = vld [vmem:[%s2 + $0x28] sm:$0xff]
    %v49 = vld [vmem:[%s2 + $0x30] sm:$0xff]
    %v50 = vld [vmem:[%s2 + $0x38] sm:$0xff]
    %52 = vset.pattern.permute.xlu0 0
    %53 = vperm.xlu0 %52, %v43
    %v54 = vpop.permute.xlu0 %53
    %57 = vset.pattern.permute.xlu0 0
    %58 = vperm.xlu0 %57, %v44
    %v59 = vpop.permute.xlu0 %58
    %62 = vset.pattern.permute.xlu0 0
    %63 = vperm.xlu0 %62, %v45
    %v64 = vpop.permute.xlu0 %63
    %67 = vset.pattern.permute.xlu0 0
    %68 = vperm.xlu0 %67, %v46
    %v69 = vpop.permute.xlu0 %68
    %72 = vset.pattern.permute.xlu0 0
    %73 = vperm.xlu0 %72, %v47
    %v74 = vpop.permute.xlu0 %73
    %77 = vset.pattern.permute.xlu0 0
    %78 = vperm.xlu0 %77, %v48
    %v79 = vpop.permute.xlu0 %78
    %82 = vset.pattern.permute.xlu0 0
    %83 = vperm.xlu0 %82, %v49
    %v84 = vpop.permute.xlu0 %83
    %87 = vset.pattern.permute.xlu0 0
    %88 = vperm.xlu0 %87, %v50
    %v89 = vpop.permute.xlu0 %88
    %vm91 = vcmask 64512
    %v93 = vsel %vm91, %v35, 0
    %v96 = vsel %vm91, %v36, 0
    %v99 = vsel %vm91, %v37, 0
    %v102 = vsel %vm91, %v38, 0
    %v105 = vsel %vm91, %v39, 0
    %v108 = vsel %vm91, %v40, 0
    %v111 = vsel %vm91, %v41, 0
    %v114 = vsel %vm91, %v42, 0
    %116 = vmatprep.subr.mxu0 0.0
    %117 = vmatpush1.msra.mxu0 0.0
    %118 = vmatprep.subr.mxu0 0.0
    %119 = vmatpush1.msra.mxu0 0.0
    %120 = vmatprep.subr.mxu0 0.0
    %121 = vmatpush1.msra.mxu0 0.0
    %122 = vmatprep.subr.mxu0 0.0
    %123 = vmatpush1.msra.mxu0 0.0
    %124 = vmatprep.subr.mxu0 0.0
    %125 = vmatpush1.msra.mxu0 0.0
    %126 = vmatprep.subr.mxu0 0.0
    %127 = vmatpush1.msra.mxu0 0.0
    %128 = vmatprep.subr.mxu0 0.0
    %129 = vmatpush1.msra.mxu0 0.0
    %130 = vmatprep.subr.mxu0 0.0
    %131 = vmatpush1.msra.mxu0 0.0
    %132 = vmatprep.subr.mxu0 0.0
    %133 = vmatpush1.msra.mxu0 0.0
    %134 = vmatprep.subr.mxu0 0.0
    %135 = vmatpush1.msra.mxu0 0.0
    %136 = vmatprep.subr.mxu0 0.0
    %137 = vmatpush1.msra.mxu0 0.0
    %138 = vmatprep.subr.mxu0 0.0
    %139 = vmatpush1.msra.mxu0 0.0
    %140 = vmatprep.subr.mxu0 0.0
    %141 = vmatpush1.msra.mxu0 0.0
    %142 = vmatprep.subr.mxu0 0.0
    %143 = vmatpush1.msra.mxu0 0.0
    %144 = vmatprep.subr.mxu0 0.0
    %145 = vmatpush1.msra.mxu0 0.0
    %146 = vmatprep.subr.mxu0 0.0
    %147 = vmatpush1.msra.mxu0 %v34
    %148 = vmatprep.subr.mxu0 0.0
    %149 = vmatpush2.msra.mxu0 0.0
    %150 = vmatprep.subr.mxu0 0.0
    %151 = vmatpush2.msra.mxu0 0.0
    %152 = vmatprep.subr.mxu0 0.0
    %153 = vmatpush2.msra.mxu0 0.0
    %154 = vmatprep.subr.mxu0 0.0
    %155 = vmatpush2.msra.mxu0 0.0
    %156 = vmatprep.subr.mxu0 0.0
    %157 = vmatpush2.msra.mxu0 0.0
    %158 = vmatprep.subr.mxu0 0.0
    %159 = vmatpush2.msra.mxu0 0.0
    %160 = vmatprep.subr.mxu0 0.0
    %161 = vmatpush2.msra.mxu0 0.0
    %162 = vmatprep.subr.mxu0 0.0
    %163 = vmatpush2.msra.mxu0 0.0
    %164 = vmatprep.subr.mxu0 0.0
    %165 = vmatpush2.msra.mxu0 0.0
    %166 = vmatprep.subr.mxu0 0.0
    %167 = vmatpush2.msra.mxu0 0.0
    %168 = vmatprep.subr.mxu0 0.0
    %169 = vmatpush2.msra.mxu0 0.0
    %170 = vmatprep.subr.mxu0 0.0
    %171 = vmatpush2.msra.mxu0 0.0
    %172 = vmatprep.subr.mxu0 0.0
    %173 = vmatpush2.msra.mxu0 0.0
    %174 = vmatprep.subr.mxu0 0.0
    %175 = vmatpush2.msra.mxu0 0.0
    %176 = vmatprep.subr.mxu0 0.0
    %177 = vmatpush2.msra.mxu0 0.0
    %178 = vmatprep.subr.mxu0 0.0
    %179 = vmatpush2.msra.mxu0 0.0
    %180 = vmatprep.mubr.f32.mxu0 0.0
    %181 = vmatmul.mubr.f32.gmra.mxu0 %v93
    %v182 = vpop.f32.mrf.mxu0
    %v183 = vadd.f32 %v54, %v182
    %v184 = vpop.f32.mrf.mxu0
    %185 = vmatprep.mubr.f32.mxu0 0.0
    %186 = vmatmul.mubr.f32.gmra.mxu0 %v96
    %v187 = vpop.f32.mrf.mxu0
    %v188 = vadd.f32 %v59, %v187
    %v189 = vpop.f32.mrf.mxu0
    %190 = vmatprep.mubr.f32.mxu0 0.0
    %191 = vmatmul.mubr.f32.gmra.mxu0 %v99
    %v192 = vpop.f32.mrf.mxu0
    %v193 = vadd.f32 %v64, %v192
    %v194 = vpop.f32.mrf.mxu0
    %195 = vmatprep.mubr.f32.mxu0 0.0
    %196 = vmatmul.mubr.f32.gmra.mxu0 %v102
    %v197 = vpop.f32.mrf.mxu0
    %v198 = vadd.f32 %v69, %v197
    %v199 = vpop.f32.mrf.mxu0
    %200 = vmatprep.mubr.f32.mxu0 0.0
    %201 = vmatmul.mubr.f32.gmra.mxu0 %v105
    %v202 = vpop.f32.mrf.mxu0
    %v203 = vadd.f32 %v74, %v202
    %v204 = vpop.f32.mrf.mxu0
    %205 = vmatprep.mubr.f32.mxu0 0.0
    %206 = vmatmul.mubr.f32.gmra.mxu0 %v108
    %v207 = vpop.f32.mrf.mxu0
    %v208 = vadd.f32 %v79, %v207
    %v209 = vpop.f32.mrf.mxu0
    %210 = vmatprep.mubr.f32.mxu0 0.0
    %211 = vmatmul.mubr.f32.gmra.mxu0 %v111
    %v212 = vpop.f32.mrf.mxu0
    %v213 = vadd.f32 %v84, %v212
    %v214 = vpop.f32.mrf.mxu0
    %215 = vmatprep.mubr.f32.mxu0 0.0
    %216 = vmatmul.mubr.f32.gmra.mxu0 %v114
    %v217 = vpop.f32.mrf.mxu0
    %v218 = vadd.f32 %v89, %v217
    %v219 = vpop.f32.mrf.mxu0
    %220 = vdwg.mxu0
    %v221 = vmax.f32 %v183, 0.0
    %v222 = vmax.f32 %v188, 0.0
    %v223 = vmax.f32 %v193, 0.0
    %v224 = vmax.f32 %v198, 0.0
    %v225 = vmax.f32 %v203, 0.0
    %v226 = vmax.f32 %v208, 0.0
    %v227 = vmax.f32 %v213, 0.0
    %v228 = vmax.f32 %v218, 0.0
    %v229 = vld [vmem:[%s3] sm:$0xff]
    %v230 = vld [vmem:[%s3 + $0x8] sm:$0xff]
    %v231 = vld [vmem:[%s3 + $0x10] sm:$0xff]
    %v232 = vld [vmem:[%s3 + $0x18] sm:$0xff]
    %v233 = vld [vmem:[%s4] sm:$0xff]
    %v234 = vld [vmem:[%s4 + $0x8] sm:$0xff]
    %v235 = vld [vmem:[%s4 + $0x10] sm:$0xff]
    %v236 = vld [vmem:[%s4 + $0x18] sm:$0xff]
    %238 = vset.pattern.permute.xlu0 0
    %239 = vperm.xlu0 %238, %v233
    %v240 = vpop.permute.xlu0 %239
    %243 = vset.pattern.permute.xlu0 0
    %244 = vperm.xlu0 %243, %v234
    %v245 = vpop.permute.xlu0 %244
    %248 = vset.pattern.permute.xlu0 0
    %249 = vperm.xlu0 %248, %v235
    %v250 = vpop.permute.xlu0 %249
    %253 = vset.pattern.permute.xlu0 0
    %254 = vperm.xlu0 %253, %v236
    %v255 = vpop.permute.xlu0 %254
    %vm257 = vcmask 523264
    %v259 = vsel %vm257, %v229, 0
    %v262 = vsel %vm257, %v230, 0
    %v265 = vsel %vm257, %v231, 0
    %v268 = vsel %vm257, %v232, 0
    %270 = vmatprep.subr.mxu0 0.0
    %271 = vmatpush1.msra.mxu0 0.0
    %272 = vmatprep.subr.mxu0 0.0
    %273 = vmatpush1.msra.mxu0 0.0
    %274 = vmatprep.subr.mxu0 0.0
    %275 = vmatpush1.msra.mxu0 0.0
    %276 = vmatprep.subr.mxu0 0.0
    %277 = vmatpush1.msra.mxu0 0.0
    %278 = vmatprep.subr.mxu0 0.0
    %279 = vmatpush1.msra.mxu0 0.0
    %280 = vmatprep.subr.mxu0 0.0
    %281 = vmatpush1.msra.mxu0 0.0
    %282 = vmatprep.subr.mxu0 0.0
    %283 = vmatpush1.msra.mxu0 0.0
    %284 = vmatprep.subr.mxu0 0.0
    %285 = vmatpush1.msra.mxu0 0.0
    %286 = vmatprep.subr.mxu0 0.0
    %287 = vmatpush1.msra.mxu0 %v228
    %288 = vmatprep.subr.mxu0 0.0
    %289 = vmatpush1.msra.mxu0 %v227
    %290 = vmatprep.subr.mxu0 0.0
    %291 = vmatpush1.msra.mxu0 %v226
    %292 = vmatprep.subr.mxu0 0.0
    %293 = vmatpush1.msra.mxu0 %v225
    %294 = vmatprep.subr.mxu0 0.0
    %295 = vmatpush1.msra.mxu0 %v224
    %296 = vmatprep.subr.mxu0 0.0
    %297 = vmatpush1.msra.mxu0 %v223
    %298 = vmatprep.subr.mxu0 0.0
    %299 = vmatpush1.msra.mxu0 %v222
    %300 = vmatprep.subr.mxu0 0.0
    %301 = vmatpush1.msra.mxu0 %v221
    %302 = vmatprep.subr.mxu0 0.0
    %303 = vmatpush2.msra.mxu0 0.0
    %304 = vmatprep.subr.mxu0 0.0
    %305 = vmatpush2.msra.mxu0 0.0
    %306 = vmatprep.subr.mxu0 0.0
    %307 = vmatpush2.msra.mxu0 0.0
    %308 = vmatprep.subr.mxu0 0.0
    %309 = vmatpush2.msra.mxu0 0.0
    %310 = vmatprep.subr.mxu0 0.0
    %311 = vmatpush2.msra.mxu0 0.0
    %312 = vmatprep.subr.mxu0 0.0
    %313 = vmatpush2.msra.mxu0 0.0
    %314 = vmatprep.subr.mxu0 0.0
    %315 = vmatpush2.msra.mxu0 0.0
    %316 = vmatprep.subr.mxu0 0.0
    %317 = vmatpush2.msra.mxu0 0.0
    %318 = vmatprep.subr.mxu0 0.0
    %319 = vmatpush2.msra.mxu0 0.0
    %320 = vmatprep.subr.mxu0 0.0
    %321 = vmatpush2.msra.mxu0 0.0
    %322 = vmatprep.subr.mxu0 0.0
    %323 = vmatpush2.msra.mxu0 0.0
    %324 = vmatprep.subr.mxu0 0.0
    %325 = vmatpush2.msra.mxu0 0.0
    %326 = vmatprep.subr.mxu0 0.0
    %327 = vmatpush2.msra.mxu0 0.0
    %328 = vmatprep.subr.mxu0 0.0
    %329 = vmatpush2.msra.mxu0 0.0
    %330 = vmatprep.subr.mxu0 0.0
    %331 = vmatpush2.msra.mxu0 0.0
    %332 = vmatprep.subr.mxu0 0.0
    %333 = vmatpush2.msra.mxu0 0.0
    %334 = vmatprep.mubr.f32.mxu0 0.0
    %335 = vmatmul.mubr.f32.gmra.mxu0 %v259
    %v336 = vpop.f32.mrf.mxu0
    %v337 = vadd.f32 %v240, %v336
    %v338 = vpop.f32.mrf.mxu0
    %339 = vmatprep.mubr.f32.mxu0 0.0
    %340 = vmatmul.mubr.f32.gmra.mxu0 %v262
    %v341 = vpop.f32.mrf.mxu0
    %v342 = vadd.f32 %v245, %v341
    %v343 = vpop.f32.mrf.mxu0
    %344 = vmatprep.mubr.f32.mxu0 0.0
    %345 = vmatmul.mubr.f32.gmra.mxu0 %v265
    %v346 = vpop.f32.mrf.mxu0
    %v347 = vadd.f32 %v250, %v346
    %v348 = vpop.f32.mrf.mxu0
    %349 = vmatprep.mubr.f32.mxu0 0.0
    %350 = vmatmul.mubr.f32.gmra.mxu0 %v268
    %v351 = vpop.f32.mrf.mxu0
    %v352 = vadd.f32 %v255, %v351
    %v353 = vpop.f32.mrf.mxu0
    %354 = vdwg.mxu0
    %v355 = vmax.f32 %v337, 0.0
    %v356 = vmax.f32 %v342, 0.0
    %v357 = vmax.f32 %v347, 0.0
    %v358 = vmax.f32 %v352, 0.0
    %v359 = vld [vmem:[%s5] sm:$0xff]
    %v360 = vld [vmem:[%s5 + $0x8] sm:$0xff]
    %v361 = vld [vmem:[%s6] sm:$0xff]
    %v362 = vld [vmem:[%s6 + $0x8] sm:$0xff]
    %364 = vset.pattern.permute.xlu0 0
    %365 = vperm.xlu0 %364, %v361
    %v366 = vpop.permute.xlu0 %365
    %369 = vset.pattern.permute.xlu0 0
    %370 = vperm.xlu0 %369, %v362
    %v371 = vpop.permute.xlu0 %370
    %vm373 = vcmask 261120
    %v375 = vsel %vm373, %v359, 0
    %v378 = vsel %vm373, %v360, 0
    %380 = vmatprep.subr.mxu0 0.0
    %381 = vmatpush1.msra.mxu0 0.0
    %382 = vmatprep.subr.mxu0 0.0
    %383 = vmatpush1.msra.mxu0 0.0
    %384 = vmatprep.subr.mxu0 0.0
    %385 = vmatpush1.msra.mxu0 0.0
    %386 = vmatprep.subr.mxu0 0.0
    %387 = vmatpush1.msra.mxu0 0.0
    %388 = vmatprep.subr.mxu0 0.0
    %389 = vmatpush1.msra.mxu0 0.0
    %390 = vmatprep.subr.mxu0 0.0
    %391 = vmatpush1.msra.mxu0 0.0
    %392 = vmatprep.subr.mxu0 0.0
    %393 = vmatpush1.msra.mxu0 0.0
    %394 = vmatprep.subr.mxu0 0.0
    %395 = vmatpush1.msra.mxu0 0.0
    %396 = vmatprep.subr.mxu0 0.0
    %397 = vmatpush1.msra.mxu0 0.0
    %398 = vmatprep.subr.mxu0 0.0
    %399 = vmatpush1.msra.mxu0 0.0
    %400 = vmatprep.subr.mxu0 0.0
    %401 = vmatpush1.msra.mxu0 0.0
    %402 = vmatprep.subr.mxu0 0.0
    %403 = vmatpush1.msra.mxu0 0.0
    %404 = vmatprep.subr.mxu0 0.0
    %405 = vmatpush1.msra.mxu0 %v358
    %406 = vmatprep.subr.mxu0 0.0
    %407 = vmatpush1.msra.mxu0 %v357
    %408 = vmatprep.subr.mxu0 0.0
    %409 = vmatpush1.msra.mxu0 %v356
    %410 = vmatprep.subr.mxu0 0.0
    %411 = vmatpush1.msra.mxu0 %v355
    %412 = vmatprep.subr.mxu0 0.0
    %413 = vmatpush2.msra.mxu0 0.0
    %414 = vmatprep.subr.mxu0 0.0
    %415 = vmatpush2.msra.mxu0 0.0
    %416 = vmatprep.subr.mxu0 0.0
    %417 = vmatpush2.msra.mxu0 0.0
    %418 = vmatprep.subr.mxu0 0.0
    %419 = vmatpush2.msra.mxu0 0.0
    %420 = vmatprep.subr.mxu0 0.0
    %421 = vmatpush2.msra.mxu0 0.0
    %422 = vmatprep.subr.mxu0 0.0
    %423 = vmatpush2.msra.mxu0 0.0
    %424 = vmatprep.subr.mxu0 0.0
    %425 = vmatpush2.msra.mxu0 0.0
    %426 = vmatprep.subr.mxu0 0.0
    %427 = vmatpush2.msra.mxu0 0.0
    %428 = vmatprep.subr.mxu0 0.0
    %429 = vmatpush2.msra.mxu0 0.0
    %430 = vmatprep.subr.mxu0 0.0
    %431 = vmatpush2.msra.mxu0 0.0
    %432 = vmatprep.subr.mxu0 0.0
    %433 = vmatpush2.msra.mxu0 0.0
    %434 = vmatprep.subr.mxu0 0.0
    %435 = vmatpush2.msra.mxu0 0.0
    %436 = vmatprep.subr.mxu0 0.0
    %437 = vmatpush2.msra.mxu0 0.0
    %438 = vmatprep.subr.mxu0 0.0
    %439 = vmatpush2.msra.mxu0 0.0
    %440 = vmatprep.subr.mxu0 0.0
    %441 = vmatpush2.msra.mxu0 0.0
    %442 = vmatprep.subr.mxu0 0.0
    %443 = vmatpush2.msra.mxu0 0.0
    %444 = vmatprep.mubr.f32.mxu0 0.0
    %445 = vmatmul.mubr.f32.gmra.mxu0 %v375
    %v446 = vpop.f32.mrf.mxu0
    %v447 = vadd.f32 %v366, %v446
    %v448 = vpop.f32.mrf.mxu0
    %449 = vmatprep.mubr.f32.mxu0 0.0
    %450 = vmatmul.mubr.f32.gmra.mxu0 %v378
    %v451 = vpop.f32.mrf.mxu0
    %v452 = vadd.f32 %v371, %v451
    %v453 = vpop.f32.mrf.mxu0
    %454 = vdwg.mxu0
    %v455 = vmax.f32 %v447, 0.0
    %v456 = vmax.f32 %v452, 0.0
    %v457 = vld [vmem:[%s7] sm:$0x1]
    %s458 = sld [smem:[#allocation2]]
    %v459 = vstv %s458
    %vm460 = vcmask 130048
    %v462 = vsel %vm460, %v457, 0
    %464 = vmatprep.subr.mxu0 0.0
    %465 = vmatpush1.msra.mxu0 0.0
    %466 = vmatprep.subr.mxu0 0.0
    %467 = vmatpush1.msra.mxu0 0.0
    %468 = vmatprep.subr.mxu0 0.0
    %469 = vmatpush1.msra.mxu0 0.0
    %470 = vmatprep.subr.mxu0 0.0
    %471 = vmatpush1.msra.mxu0 0.0
    %472 = vmatprep.subr.mxu0 0.0
    %473 = vmatpush1.msra.mxu0 0.0
    %474 = vmatprep.subr.mxu0 0.0
    %475 = vmatpush1.msra.mxu0 0.0
    %476 = vmatprep.subr.mxu0 0.0
    %477 = vmatpush1.msra.mxu0 0.0
    %478 = vmatprep.subr.mxu0 0.0
    %479 = vmatpush1.msra.mxu0 0.0
    %480 = vmatprep.subr.mxu0 0.0
    %481 = vmatpush1.msra.mxu0 0.0
    %482 = vmatprep.subr.mxu0 0.0
    %483 = vmatpush1.msra.mxu0 0.0
    %484 = vmatprep.subr.mxu0 0.0
    %485 = vmatpush1.msra.mxu0 0.0
    %486 = vmatprep.subr.mxu0 0.0
    %487 = vmatpush1.msra.mxu0 0.0
    %488 = vmatprep.subr.mxu0 0.0
    %489 = vmatpush1.msra.mxu0 0.0
    %490 = vmatprep.subr.mxu0 0.0
    %491 = vmatpush1.msra.mxu0 0.0
    %492 = vmatprep.subr.mxu0 0.0
    %493 = vmatpush1.msra.mxu0 %v456
    %494 = vmatprep.subr.mxu0 0.0
    %495 = vmatpush1.msra.mxu0 %v455
    %496 = vmatprep.subr.mxu0 0.0
    %497 = vmatpush2.msra.mxu0 0.0
    %498 = vmatprep.subr.mxu0 0.0
    %499 = vmatpush2.msra.mxu0 0.0
    %500 = vmatprep.subr.mxu0 0.0
    %501 = vmatpush2.msra.mxu0 0.0
    %502 = vmatprep.subr.mxu0 0.0
    %503 = vmatpush2.msra.mxu0 0.0
    %504 = vmatprep.subr.mxu0 0.0
    %505 = vmatpush2.msra.mxu0 0.0
    %506 = vmatprep.subr.mxu0 0.0
    %507 = vmatpush2.msra.mxu0 0.0
    %508 = vmatprep.subr.mxu0 0.0
    %509 = vmatpush2.msra.mxu0 0.0
    %510 = vmatprep.subr.mxu0 0.0
    %511 = vmatpush2.msra.mxu0 0.0
    %512 = vmatprep.subr.mxu0 0.0
    %513 = vmatpush2.msra.mxu0 0.0
    %514 = vmatprep.subr.mxu0 0.0
    %515 = vmatpush2.msra.mxu0 0.0
    %516 = vmatprep.subr.mxu0 0.0
    %517 = vmatpush2.msra.mxu0 0.0
    %518 = vmatprep.subr.mxu0 0.0
    %519 = vmatpush2.msra.mxu0 0.0
    %520 = vmatprep.subr.mxu0 0.0
    %521 = vmatpush2.msra.mxu0 0.0
    %522 = vmatprep.subr.mxu0 0.0
    %523 = vmatpush2.msra.mxu0 0.0
    %524 = vmatprep.subr.mxu0 0.0
    %525 = vmatpush2.msra.mxu0 0.0
    %526 = vmatprep.subr.mxu0 0.0
    %527 = vmatpush2.msra.mxu0 0.0
    %528 = vmatprep.mubr.f32.mxu0 0.0
    %529 = vmatmul.mubr.f32.gmra.mxu0 %v462
    %v530 = vpop.f32.mrf.mxu0
    %v531 = vadd.f32 %v459, %v530
    %v532 = vpop.f32.mrf.mxu0
    %533 = vdwg.mxu0
    %534 = vst [vmem:[#allocation3] sm:$0x1] %v531
    // Predicated region
    $region38: #{tpu_custom_call.1} parent=1 // pred_check
      _
    $region39: #{tpu_custom_call.1} parent=1 // pred_check_branch
      %536 = sbr.rel (0) target = $region41
    $region40: #{tpu_custom_call.1} parent=1 // pred_region
      %s538 = ssub.s32 16, 16
      %539 = vsyncadd [#allocation4], %s538
      %s541 = sshll.u32 [#allocation3], 4
      %s542 = int_to_ptr.vmem [resolvable:$true] %s541
      %544 = dma.vmem_to_hbm [thread:$0]  %s542, 16, %s9, [#allocation4]
    $region41: #{tpu_custom_call.1} parent=1 // pred_fallthru
      _
    // Predicated region
    $region42: #{tpu_custom_call.1} parent=1 // pred_check
      _
    $region43: #{tpu_custom_call.1} parent=1 // pred_check_branch
      %546 = sbr.rel (0) target = $region45
    $region44: #{tpu_custom_call.1} parent=1 // pred_region
      %547 = dma.done [#allocation4], 16
    $region45: #{tpu_custom_call.1} parent=1 // pred_fallthru
      _
    %548 = vsyncpa [#allocation4], 1

</llo_original>
